<compile_context>
chip_gen: v5e
topology: v5e:2x2
jax: 0.10.0
libtpu: 0.0.40
codegen_flags: <defaults>
</compile_context>

<pallas_src>
import functools

import numpy as np
import jax
import jax.numpy as jnp
from jax import lax
from jax.experimental import pallas as pl
from jax.experimental.pallas import tpu as pltpu


# ----------------------------------------------------------------------------
# pltpu.roll availability / direction probe (cached).  Guarantees correctness
# of the lane-shift helper regardless of the Mosaic rotate convention; if roll
# cannot be lowered for narrow slabs we fall back to slice+concat shifts
# (still whole-block operations -- never per-sample).
# ----------------------------------------------------------------------------
_ROLL_MODE = None  # "jnp" (matches jnp.roll), "rev" (reversed), or "off"


def _roll_probe_kernel(x_ref, o_ref):
    o_ref[...] = pltpu.roll(x_ref[...], 1, axis=1)


def _probe_roll_mode():
    global _ROLL_MODE
    if _ROLL_MODE is not None:
        return _ROLL_MODE
    try:
        x = np.arange(8 * 24, dtype=np.float32).reshape(8, 24)
        y = pl.pallas_call(
            _roll_probe_kernel,
            out_shape=jax.ShapeDtypeStruct((8, 24), jnp.float32),
        )(jnp.asarray(x))
        y = np.asarray(jax.block_until_ready(y))
        if np.array_equal(y, np.roll(x, 1, axis=1)):
            _ROLL_MODE = "jnp"
        elif np.array_equal(y, np.roll(x, -1, axis=1)):
            _ROLL_MODE = "rev"
        else:
            _ROLL_MODE = "off"
    except Exception:
        _ROLL_MODE = "off"
    return _ROLL_MODE


# ----------------------------------------------------------------------------
# Kernel
# ----------------------------------------------------------------------------
def _sci_block_kernel(x_ref, mask_ref, w1_ref, w2_ref, out_ref, *,
                      ksize, pad, roll_mode):
    """One batch block of SCI_Block.

    x_ref   : (2C, N), N = bt*Lseg.  Rows [0,C) = replication-padded odd
              stream, rows [C,2C) = padded even stream; each sample owns Lseg
              consecutive lanes.
    mask_ref: (2, N) f32 {0,1}: row 0 -> segment-local pos < pad,
              row 1 -> pos >= pad + S/2 (the replication-pad edge columns).
    w1_ref  : (2, K, 2CE, 2C) per-tap block-diagonal first-conv weights
              (pair 0 = psi/phi, pair 1 = nu/ro).
    w2_ref  : (2, K, 2C, 2CE) per-tap second-conv weights (pair 0 packed with
              swapped output halves -> kernel sees the gate as [phi; psi]).
    out_ref : (2C, N).  Rows [0,C) = F_even_final, rows [C,2C) = F_odd_final,
              valid at segment-local positions [0, S/2).
    """
    n = x_ref.shape[-1]
    c2 = out_ref.shape[0]
    cdt = w1_ref.dtype                       # matmul compute dtype

    def shift_left(v, k):                    # v'[:, j] = v[:, (j + k) % n]
        k = k % n
        if k == 0:
            return v
        if roll_mode == "jnp":               # pltpu.roll == jnp.roll convention
            return pltpu.roll(v, n - k, axis=1)
        if roll_mode == "rev":               # reversed convention
            return pltpu.roll(v, k, axis=1)
        # Fallback: one whole-slab slice+concat (no per-sample work).
        return jnp.concatenate([v[:, k:], v[:, :k]], axis=1)

    def shift_right(v, k):
        return shift_left(v, (-k) % n)

    def conv_pair(x, pair):
        """Two stacked bias-free Conv1d layers of one fused branch pair, as K
        lane-shifted matmuls per layer accumulated in f32 (LeakyReLU(0.01)
        between, Tanh after).  For very small K*C this could instead run as
        K*C broadcast FMAs on the VPU; the MXU path is kept for generality."""
        xc = x.astype(cdt)                   # cast BEFORE building shifted operands
        acc = jnp.dot(w1_ref[pair, 0], xc, preferred_element_type=jnp.float32)
        for k in range(1, ksize):
            acc = acc + jnp.dot(w1_ref[pair, k], shift_left(xc, k),
                                preferred_element_type=jnp.float32)
        h = jnp.where(acc >= 0, acc, 0.01 * acc)          # nn.LeakyReLU(0.01)
        # TODO(synk): nn.Dropout(0.5) is treated as identity (eval/inference
        # mode); training-mode stochastic dropout is not reproduced.
        h = h.astype(cdt)
        acc2 = jnp.dot(w2_ref[pair, 0], h, preferred_element_type=jnp.float32)
        for k in range(1, ksize):
            acc2 = acc2 + jnp.dot(w2_ref[pair, k], shift_left(h, k),
                                  preferred_element_type=jnp.float32)
        return jnp.tanh(acc2)                             # nn.Tanh

    x = x_ref[...]
    xf = x.astype(jnp.float32)                            # gating math in f32
    masks = mask_ref[...]
    left = masks[0:1, :] > 0.5
    right = masks[1:2, :] > 0.5

    # --- psi/phi pair: gate = [phi(F_even); psi(F_odd)], valid at pos [0,T).
    g = conv_pair(x, 0)
    # Move the gate into the replication-padded layout: valid values to
    # [pad, pad+T), then replicate the segment edges into the pad columns with
    # masked 1-lane rotations.
    g = shift_right(g, pad)
    for _ in range(pad):
        g = jnp.where(left, shift_left(g, 1), g)
    for _ in range(pad):
        g = jnp.where(right, shift_right(g, 1), g)

    # [F_odd_s; F_even_s] in replication-padded layout (exp-gating in f32).
    s_cat = xf * jnp.exp(g)

    # --- nu/ro pair on the gated streams: [nu(F_odd_s); ro(F_even_s)].
    z = conv_pair(s_cat, 1)                               # valid at pos [0, T)
    s_val = shift_left(s_cat, pad)                        # gated streams at [0, T)

    row = lax.broadcasted_iota(jnp.int32, (c2, 1), 0)
    sign = jnp.where(row < c2 // 2, -1.0, 1.0)
    # rows [0,C):  F_even_final = F_odd_s  - nu(F_odd_s)
    # rows [C,2C): F_odd_final  = F_even_s + ro(F_even_s)
    out_ref[...] = s_val + sign * z


# ----------------------------------------------------------------------------
# Weight packing: per-tap block-diagonal fusion of a branch pair
# ----------------------------------------------------------------------------
def _pack_pair(wa, wb, *, swap_out=False):
    """torch Conv1d weights (C_out, C_in, K) -> (K, 2*C_out, 2*C_in).

    `wa` acts on input rows [0, C_in), `wb` on rows [C_in, 2*C_in).  With
    swap_out=True the output halves are swapped (wb's output on top)."""
    wa_t = jnp.transpose(wa, (2, 0, 1))      # (K, C_out, C_in)
    wb_t = jnp.transpose(wb, (2, 0, 1))
    k, co, ci = wa_t.shape
    z = jnp.zeros((k, co, ci), wa_t.dtype)
    top = jnp.concatenate([wa_t, z], axis=2)   # consumes input rows [0, ci)
    bot = jnp.concatenate([z, wb_t], axis=2)   # consumes input rows [ci, 2ci)
    if swap_out:
        return jnp.concatenate([bot, top], axis=1)
    return jnp.concatenate([top, bot], axis=1)


# ----------------------------------------------------------------------------
# Generation-aware VMEM budgeting / block-batch selection
# ----------------------------------------------------------------------------
def _round_up(v, m):
    return -(-v // m) * m


def _tile_bytes(rows, lanes, itemsize):
    return _round_up(max(rows, 1), 8) * _round_up(max(lanes, 1), 128) * itemsize


def _vmem_limit_bytes():
    cap = 128 * 1024 * 1024
    try:
        info = pltpu.get_tpu_info()
        cap = int(getattr(info, "vmem_capacity_bytes", cap))
    except Exception:
        pass
    if cap <= 64 * 1024 * 1024:          # v7x-class: 64 MiB physical VMEM
        return 40 * 1024 * 1024
    return 96 * 1024 * 1024              # v5e/v6e: 128 MiB physical VMEM


def _block_working_set(bt, lseg, c2, ce2, in_itemsize):
    lanes = bt * lseg
    s2c = _tile_bytes(c2, lanes, 4)      # f32 slab, 2C rows
    s2ce = _tile_bytes(ce2, lanes, 4)    # f32 slab, 2CE rows
    # double-buffered input + output blocks, plus ~12 live 2C-row and ~6 live
    # 2CE-row f32 temporaries (shifted copies, gate, gated streams, accums).
    io = 2 * _tile_bytes(c2, lanes, in_itemsize) + 2 * s2c
    return io + 12 * s2c + 6 * s2ce


def _pick_block_batch(batch, lseg, c2, ce2, in_itemsize, budget_bytes):
    divisors = [d for d in range(1, batch + 1) if batch % d == 0]
    fits = [d for d in divisors
            if _block_working_set(d, lseg, c2, ce2, in_itemsize) <= budget_bytes]
    # Prefer lane-aligned blocks that leave >= 2 grid steps (v7x: 2 TCs).
    best = [d for d in fits if d < batch and (d * lseg) % 128 == 0]
    if best:
        return max(best)
    if batch in fits:
        return batch
    best = [d for d in fits if (d * lseg) % 128 == 0]
    if best:
        return max(best)
    return batch   # nothing fits cleanly; caller may override via block_batch=


# ----------------------------------------------------------------------------
# Wrapper
# ----------------------------------------------------------------------------
def sci_block(x, params, *, kernel, padding, block_batch=None,
              compute_dtype=jnp.float32):
    """SCI_Block forward.  params: torch-layout Conv1d weights
    psi1/psi2/phi1/phi2/nu1/nu2/ro1/ro2 with shapes (C*E, C, K) / (C, C*E, K).

    `compute_dtype` is the matmul operand / input-DMA dtype (jnp.bfloat16
    recommended on v5e/v6e/v7x for bandwidth + MXU peak); accumulation and the
    exp/tanh gating math stay float32 inside the kernel."""
    b, c, s = x.shape
    assert s % 2 == 0, "sequence length must be even"
    t = s // 2
    ksz = kernel
    pad = padding
    # stride == 1 and padding == kernel - 1 make conv_op length-preserving,
    # which the module's elementwise gating requires.
    assert pad == ksz - 1, "SCI_Block needs padding == kernel - 1 (stride 1)"
    lseg = t + 2 * pad

    ce = params["psi1"].shape[0]
    c2, ce2 = 2 * c, 2 * ce

    # --- XLA glue: even/odd split + replication pad + stream packing --------
    f_even = x[:, :, 1::2]        # split(seq_size): idx_even = 1::2
    f_odd = x[:, :, 0::2]         #                  idx_odd  = 0::2

    def rep_pad(v):
        if pad == 0:
            return v
        lft = jnp.broadcast_to(v[:, :, :1], (b, c, pad))   # ReplicationPad1d
        rgt = jnp.broadcast_to(v[:, :, -1:], (b, c, pad))
        return jnp.concatenate([lft, v, rgt], axis=2)

    # rows [0,C) = odd stream (psi / nu inputs), rows [C,2C) = even stream.
    x_cat = jnp.concatenate([rep_pad(f_odd), rep_pad(f_even)], axis=1)
    x_cat = jnp.transpose(x_cat, (1, 0, 2)).reshape(c2, b * lseg)
    x_cat = x_cat.astype(compute_dtype)

    # --- weights: per-tap block-diagonal pair fusion -------------------------
    w1 = jnp.stack([_pack_pair(params["psi1"], params["phi1"]),
                    _pack_pair(params["nu1"], params["ro1"])], axis=0)
    # pair 0's second layer swaps output halves so the kernel directly gets the
    # gate ordering [phi(F_even); psi(F_odd)] for the [odd; even] stream slab.
    w2 = jnp.stack([_pack_pair(params["psi2"], params["phi2"], swap_out=True),
                    _pack_pair(params["nu2"], params["ro2"])], axis=0)
    w1 = w1.astype(compute_dtype)
    w2 = w2.astype(compute_dtype)

    vmem_limit = _vmem_limit_bytes()
    in_itemsize = jnp.dtype(compute_dtype).itemsize
    bt = block_batch or _pick_block_batch(b, lseg, c2, ce2, in_itemsize,
                                          (vmem_limit * 3) // 4)
    assert b % bt == 0, "block_batch must divide the batch size"
    assert bt == b or (bt * lseg) % 128 == 0, (
        "block_batch must give lane-aligned (x128) blocks or cover the batch")

    # Segment-local edge masks (identical for every block) -> (2, bt*Lseg).
    pos = np.arange(bt * lseg) % lseg
    masks = jnp.asarray(np.stack([pos < pad, pos >= pad + t]).astype(np.float32))

    grid = (b // bt,)
    grid_spec = pltpu.PrefetchScalarGridSpec(
        num_scalar_prefetch=0,
        grid=grid,
        in_specs=[
            pl.BlockSpec((c2, bt * lseg), lambda i: (0, i)),
            pl.BlockSpec((2, bt * lseg), lambda i: (0, 0)),
            pl.BlockSpec(w1.shape, lambda i: (0, 0, 0, 0)),
            pl.BlockSpec(w2.shape, lambda i: (0, 0, 0, 0)),
        ],
        out_specs=pl.BlockSpec((c2, bt * lseg), lambda i: (0, i)),
    )
    compiler_params = pltpu.CompilerParams(
        dimension_semantics=("parallel",),        # batch blocks are independent
        vmem_limit_bytes=vmem_limit,
    )
    out_shape = jax.ShapeDtypeStruct((c2, b * lseg), jnp.float32)

    def _run(roll_mode):
        kern = functools.partial(_sci_block_kernel, ksize=ksz, pad=pad,
                                 roll_mode=roll_mode)
        fn = pl.pallas_call(kern, grid_spec=grid_spec, out_shape=out_shape,
                            compiler_params=compiler_params)
        return fn(x_cat, masks, w1, w2)

    mode = _probe_roll_mode()
    if mode == "off":
        out = _run("off")
    else:
        try:
            out = jax.block_until_ready(_run(mode))
        except Exception:
            # Mosaic may restrict tpu.rotate for some shapes/dtypes; fall back
            # to whole-slab slice+concat shifts.
            out = _run("off")

    out = out.reshape(c2, b, lseg)[:, :, :t]
    even_final = jnp.transpose(out[:c], (1, 0, 2))        # (B, C, S//2)
    odd_final = jnp.transpose(out[c:], (1, 0, 2))
    return even_final, odd_final


# ----------------------------------------------------------------------------
# Self-test
# ----------------------------------------------------------------------------
if __name__ == "__main__":
    # SCI_Block hyper-params; padding = kernel - 1 keeps conv_op length-preserving.
    B, C, S = 2, 4, 16
    expand, K, stride, padding = 2, 3, 1, 2
    CE = C * expand

    key = jax.random.PRNGKey(0)
    kx, *kw = jax.random.split(key, 9)

    params = {}
    for i, name in enumerate(["psi", "phi", "nu", "ro"]):
        params[name + "1"] = 0.3 * jax.random.normal(kw[2 * i], (CE, C, K), jnp.float32)
        params[name + "2"] = 0.3 * jax.random.normal(kw[2 * i + 1], (C, CE, K), jnp.float32)

    x = jax.random.normal(kx, (B, C, S), jnp.float32)

    even_final, odd_final = sci_block(x, params, kernel=K, padding=padding)
    jax.block_until_ready((even_final, odd_final))

    # Independent pure-XLA reference (lax.conv) for the correctness check.
    def ref_conv_op(xb, w1, w2, pad):
        xp = jnp.concatenate([jnp.repeat(xb[:, :, :1], pad, axis=2), xb,
                              jnp.repeat(xb[:, :, -1:], pad, axis=2)], axis=2)
        dn = ("NCH", "OIH", "NCH")
        h = lax.conv_general_dilated(xp, w1, (1,), "VALID", dimension_numbers=dn,
                                     precision=lax.Precision.HIGHEST)
        h = jnp.where(h >= 0, h, 0.01 * h)
        y = lax.conv_general_dilated(h, w2, (1,), "VALID", dimension_numbers=dn,
                                     precision=lax.Precision.HIGHEST)
        return jnp.tanh(y)

    r_even = x[:, :, 1::2]
    r_odd = x[:, :, 0::2]
    r_even_s = r_even * jnp.exp(ref_conv_op(r_odd, params["psi1"], params["psi2"], padding))
    r_odd_s = r_odd * jnp.exp(ref_conv_op(r_even, params["phi1"], params["phi2"], padding))
    ref_even = r_odd_s - ref_conv_op(r_odd_s, params["nu1"], params["nu2"], padding)
    ref_odd = r_even_s + ref_conv_op(r_even_s, params["ro1"], params["ro2"], padding)

    assert even_final.shape == (B, C, S // 2)
    assert odd_final.shape == (B, C, S // 2)
    np.testing.assert_allclose(np.asarray(even_final), np.asarray(ref_even),
                               rtol=1e-2, atol=1e-2)
    np.testing.assert_allclose(np.asarray(odd_final), np.asarray(ref_odd),
                               rtol=1e-2, atol=1e-2)

    # bfloat16 compute / input-DMA path (recommended on v5e/v6e/v7x): smoke run.
    ef16, of16 = sci_block(x, params, kernel=K, padding=padding,
                           compute_dtype=jnp.bfloat16)
    jax.block_until_ready((ef16, of16))
    assert np.all(np.isfinite(np.asarray(ef16)))
    assert np.all(np.isfinite(np.asarray(of16)))

    print("KERNEL_OK")
</pallas_src>

<mosaic_0001>
module attributes {stable_mosaic.version = 11 : i64} {
  func.func @_roll_probe_kernel(%arg0: memref<8x24xf32, #tpu.memory_space<vmem>>, %arg1: memref<8x24xf32, #tpu.memory_space<vmem>>) attributes {dimension_semantics = [], scalar_prefetch = 0 : i64, scratch_operands = 0 : i64, tpu.core_type = #tpu.core_type<tc>} {
    %c0 = arith.constant 0 : index
    %c0_0 = arith.constant 0 : index
    %0 = vector.load %arg0[%c0, %c0_0] : memref<8x24xf32, #tpu.memory_space<vmem>>, vector<8x24xf32>
    %c1_i32 = arith.constant 1 : i32
    %1 = tpu.dynamic_rotate %0 by %c1_i32 dim 1 : vector<8x24xf32>, i32 -> vector<8x24xf32>
    %c0_1 = arith.constant 0 : index
    %c0_2 = arith.constant 0 : index
    %2 = vector.load %arg1[%c0_1, %c0_2] : memref<8x24xf32, #tpu.memory_space<vmem>>, vector<8x24xf32>
    tpu.vector_store %arg1[%c0_1, %c0_2], %1 {strides = array<i32>} : memref<8x24xf32, #tpu.memory_space<vmem>>, vector<8x24xf32>,
    return
  }
}

module attributes {stable_mosaic.version = 11 : i64} {
  func.func @_sci_block_kernel(%arg0: i32, %arg1: memref<8x24xf32, #tpu.memory_space<vmem>>, %arg2: memref<2x24xf32, #tpu.memory_space<vmem>>, %arg3: memref<2x3x16x8xf32, #tpu.memory_space<vmem>>, %arg4: memref<2x3x8x16xf32, #tpu.memory_space<vmem>>, %arg5: memref<8x24xf32, #tpu.memory_space<vmem>>) attributes {dimension_semantics = [#tpu.dimension_semantics<parallel>], iteration_bounds = array<i64: 1>, scalar_prefetch = 0 : i64, scratch_operands = 0 : i64, tpu.core_type = #tpu.core_type<tc>, window_params = [{transform_indices = @transform_0, window_bounds = array<i64: 8, 24>}, {pipeline_mode = #tpu.pipeline_mode<synchronous>, transform_indices = @transform_1, window_bounds = array<i64: 2, 24>}, {pipeline_mode = #tpu.pipeline_mode<synchronous>, transform_indices = @transform_2, window_bounds = array<i64: 2, 3, 16, 8>}, {pipeline_mode = #tpu.pipeline_mode<synchronous>, transform_indices = @transform_3, window_bounds = array<i64: 2, 3, 8, 16>}, {transform_indices = @transform_4, window_bounds = array<i64: 8, 24>}]} {
    %c0 = arith.constant 0 : index
    %c0_0 = arith.constant 0 : index
    %0 = vector.load %arg1[%c0, %c0_0] : memref<8x24xf32, #tpu.memory_space<vmem>>, vector<8x24xf32>
    %c0_1 = arith.constant 0 : index
    %c0_2 = arith.constant 0 : index
    %1 = vector.load %arg2[%c0_1, %c0_2] : memref<2x24xf32, #tpu.memory_space<vmem>>, vector<2x24xf32>
    %2 = vector.extract_strided_slice %1 {offsets = [0, 0], sizes = [1, 24], strides = [1, 1]} : vector<2x24xf32> to vector<1x24xf32>
    %cst = arith.constant 5.000000e-01 : f32
    %3 = vector.broadcast %cst : f32 to vector<1x24xf32>
    %4 = arith.cmpf ogt, %2, %3 : vector<1x24xf32>
    %5 = vector.extract_strided_slice %1 {offsets = [1, 0], sizes = [1, 24], strides = [1, 1]} : vector<2x24xf32> to vector<1x24xf32>
    %cst_3 = arith.constant 5.000000e-01 : f32
    %6 = vector.broadcast %cst_3 : f32 to vector<1x24xf32>
    %7 = arith.cmpf ogt, %5, %6 : vector<1x24xf32>
    %c0_4 = arith.constant 0 : index
    %c0_5 = arith.constant 0 : index
    %c0_6 = arith.constant 0 : index
    %c0_7 = arith.constant 0 : index
    %8 = vector.load %arg3[%c0_4, %c0_5, %c0_6, %c0_7] : memref<2x3x16x8xf32, #tpu.memory_space<vmem>>, vector<1x1x16x8xf32>
    %9 = vector.shape_cast %8 : vector<1x1x16x8xf32> to vector<16x8xf32>
    %cst_8 = arith.constant dense<0.000000e+00> : vector<16x24xf32>
    %10 = tpu.matmul %9, %0, %cst_8 {dimension_numbers = #tpu.dot_dimension_numbers<[1], [0], [0], [1], [0, 0, 1, 1], [], []>} : vector<16x8xf32>, vector<8x24xf32>, vector<16x24xf32> -> vector<16x24xf32>
    %c0_9 = arith.constant 0 : index
    %c1 = arith.constant 1 : index
    %c0_10 = arith.constant 0 : index
    %c0_11 = arith.constant 0 : index
    %11 = vector.load %arg3[%c0_9, %c1, %c0_10, %c0_11] : memref<2x3x16x8xf32, #tpu.memory_space<vmem>>, vector<1x1x16x8xf32>
    %12 = vector.shape_cast %11 : vector<1x1x16x8xf32> to vector<16x8xf32>
    %13 = vector.extract_strided_slice %0 {offsets = [0, 1], sizes = [8, 23], strides = [1, 1]} : vector<8x24xf32> to vector<8x23xf32>
    %14 = vector.extract_strided_slice %0 {offsets = [0, 0], sizes = [8, 1], strides = [1, 1]} : vector<8x24xf32> to vector<8x1xf32>
    %15 = tpu.concatenate %13, %14 in 1 : vector<8x23xf32>, vector<8x1xf32> -> vector<8x24xf32>
    %cst_12 = arith.constant dense<0.000000e+00> : vector<16x24xf32>
    %16 = tpu.matmul %12, %15, %cst_12 {dimension_numbers = #tpu.dot_dimension_numbers<[1], [0], [0], [1], [0, 0, 1, 1], [], []>} : vector<16x8xf32>, vector<8x24xf32>, vector<16x24xf32> -> vector<16x24xf32>
    %17 = arith.addf %10, %16 : vector<16x24xf32>
    %c0_13 = arith.constant 0 : index
    %c2 = arith.constant 2 : index
    %c0_14 = arith.constant 0 : index
    %c0_15 = arith.constant 0 : index
    %18 = vector.load %arg3[%c0_13, %c2, %c0_14, %c0_15] : memref<2x3x16x8xf32, #tpu.memory_space<vmem>>, vector<1x1x16x8xf32>
    %19 = vector.shape_cast %18 : vector<1x1x16x8xf32> to vector<16x8xf32>
    %20 = vector.extract_strided_slice %0 {offsets = [0, 2], sizes = [8, 22], strides = [1, 1]} : vector<8x24xf32> to vector<8x22xf32>
    %21 = vector.extract_strided_slice %0 {offsets = [0, 0], sizes = [8, 2], strides = [1, 1]} : vector<8x24xf32> to vector<8x2xf32>
    %22 = tpu.concatenate %20, %21 in 1 : vector<8x22xf32>, vector<8x2xf32> -> vector<8x24xf32>
    %cst_16 = arith.constant dense<0.000000e+00> : vector<16x24xf32>
    %23 = tpu.matmul %19, %22, %cst_16 {dimension_numbers = #tpu.dot_dimension_numbers<[1], [0], [0], [1], [0, 0, 1, 1], [], []>} : vector<16x8xf32>, vector<8x24xf32>, vector<16x24xf32> -> vector<16x24xf32>
    %24 = arith.addf %17, %23 : vector<16x24xf32>
    %cst_17 = arith.constant 0.000000e+00 : f32
    %25 = vector.broadcast %cst_17 : f32 to vector<16x24xf32>
    %26 = arith.cmpf oge, %24, %25 : vector<16x24xf32>
    %cst_18 = arith.constant 0.00999999977 : f32
    %27 = vector.broadcast %cst_18 : f32 to vector<16x24xf32>
    %28 = arith.mulf %27, %24 : vector<16x24xf32>
    %29 = arith.select %26, %24, %28 : vector<16x24xi1>, vector<16x24xf32>
    %c0_19 = arith.constant 0 : index
    %c0_20 = arith.constant 0 : index
    %c0_21 = arith.constant 0 : index
    %c0_22 = arith.constant 0 : index
    %30 = vector.load %arg4[%c0_19, %c0_20, %c0_21, %c0_22] : memref<2x3x8x16xf32, #tpu.memory_space<vmem>>, vector<1x1x8x16xf32>
    %31 = vector.shape_cast %30 : vector<1x1x8x16xf32> to vector<8x16xf32>
    %cst_23 = arith.constant dense<0.000000e+00> : vector<8x24xf32>
    %32 = tpu.matmul %31, %29, %cst_23 {dimension_numbers = #tpu.dot_dimension_numbers<[1], [0], [0], [1], [0, 0, 1, 1], [], []>} : vector<8x16xf32>, vector<16x24xf32>, vector<8x24xf32> -> vector<8x24xf32>
    %c0_24 = arith.constant 0 : index
    %c1_25 = arith.constant 1 : index
    %c0_26 = arith.constant 0 : index
    %c0_27 = arith.constant 0 : index
    %33 = vector.load %arg4[%c0_24, %c1_25, %c0_26, %c0_27] : memref<2x3x8x16xf32, #tpu.memory_space<vmem>>, vector<1x1x8x16xf32>
    %34 = vector.shape_cast %33 : vector<1x1x8x16xf32> to vector<8x16xf32>
    %35 = vector.extract_strided_slice %29 {offsets = [0, 1], sizes = [16, 23], strides = [1, 1]} : vector<16x24xf32> to vector<16x23xf32>
    %36 = vector.extract_strided_slice %29 {offsets = [0, 0], sizes = [16, 1], strides = [1, 1]} : vector<16x24xf32> to vector<16x1xf32>
    %37 = tpu.concatenate %35, %36 in 1 : vector<16x23xf32>, vector<16x1xf32> -> vector<16x24xf32>
    %cst_28 = arith.constant dense<0.000000e+00> : vector<8x24xf32>
    %38 = tpu.matmul %34, %37, %cst_28 {dimension_numbers = #tpu.dot_dimension_numbers<[1], [0], [0], [1], [0, 0, 1, 1], [], []>} : vector<8x16xf32>, vector<16x24xf32>, vector<8x24xf32> -> vector<8x24xf32>
    %39 = arith.addf %32, %38 : vector<8x24xf32>
    %c0_29 = arith.constant 0 : index
    %c2_30 = arith.constant 2 : index
    %c0_31 = arith.constant 0 : index
    %c0_32 = arith.constant 0 : index
    %40 = vector.load %arg4[%c0_29, %c2_30, %c0_31, %c0_32] : memref<2x3x8x16xf32, #tpu.memory_space<vmem>>, vector<1x1x8x16xf32>
    %41 = vector.shape_cast %40 : vector<1x1x8x16xf32> to vector<8x16xf32>
    %42 = vector.extract_strided_slice %29 {offsets = [0, 2], sizes = [16, 22], strides = [1, 1]} : vector<16x24xf32> to vector<16x22xf32>
    %43 = vector.extract_strided_slice %29 {offsets = [0, 0], sizes = [16, 2], strides = [1, 1]} : vector<16x24xf32> to vector<16x2xf32>
    %44 = tpu.concatenate %42, %43 in 1 : vector<16x22xf32>, vector<16x2xf32> -> vector<16x24xf32>
    %cst_33 = arith.constant dense<0.000000e+00> : vector<8x24xf32>
    %45 = tpu.matmul %41, %44, %cst_33 {dimension_numbers = #tpu.dot_dimension_numbers<[1], [0], [0], [1], [0, 0, 1, 1], [], []>} : vector<8x16xf32>, vector<16x24xf32>, vector<8x24xf32> -> vector<8x24xf32>
    %46 = arith.addf %39, %45 : vector<8x24xf32>
    %47 = math.tanh %46 : vector<8x24xf32>
    %48 = vector.extract_strided_slice %47 {offsets = [0, 22], sizes = [8, 2], strides = [1, 1]} : vector<8x24xf32> to vector<8x2xf32>
    %49 = vector.extract_strided_slice %47 {offsets = [0, 0], sizes = [8, 22], strides = [1, 1]} : vector<8x24xf32> to vector<8x22xf32>
    %50 = tpu.concatenate %48, %49 in 1 : vector<8x2xf32>, vector<8x22xf32> -> vector<8x24xf32>
    %51 = vector.extract_strided_slice %50 {offsets = [0, 1], sizes = [8, 23], strides = [1, 1]} : vector<8x24xf32> to vector<8x23xf32>
    %52 = vector.extract_strided_slice %50 {offsets = [0, 0], sizes = [8, 1], strides = [1, 1]} : vector<8x24xf32> to vector<8x1xf32>
    %53 = tpu.concatenate %51, %52 in 1 : vector<8x23xf32>, vector<8x1xf32> -> vector<8x24xf32>
    %54 = vector.shape_cast %4 : vector<1x24xi1> to vector<1x24xi1>
    %55 = vector.broadcast %54 : vector<1x24xi1> to vector<8x24xi1>
    %56 = arith.select %55, %53, %50 : vector<8x24xi1>, vector<8x24xf32>
    %57 = vector.extract_strided_slice %56 {offsets = [0, 1], sizes = [8, 23], strides = [1, 1]} : vector<8x24xf32> to vector<8x23xf32>
    %58 = vector.extract_strided_slice %56 {offsets = [0, 0], sizes = [8, 1], strides = [1, 1]} : vector<8x24xf32> to vector<8x1xf32>
    %59 = tpu.concatenate %57, %58 in 1 : vector<8x23xf32>, vector<8x1xf32> -> vector<8x24xf32>
    %60 = vector.shape_cast %4 : vector<1x24xi1> to vector<1x24xi1>
    %61 = vector.broadcast %60 : vector<1x24xi1> to vector<8x24xi1>
    %62 = arith.select %61, %59, %56 : vector<8x24xi1>, vector<8x24xf32>
    %63 = vector.extract_strided_slice %62 {offsets = [0, 23], sizes = [8, 1], strides = [1, 1]} : vector<8x24xf32> to vector<8x1xf32>
    %64 = vector.extract_strided_slice %62 {offsets = [0, 0], sizes = [8, 23], strides = [1, 1]} : vector<8x24xf32> to vector<8x23xf32>
    %65 = tpu.concatenate %63, %64 in 1 : vector<8x1xf32>, vector<8x23xf32> -> vector<8x24xf32>
    %66 = vector.shape_cast %7 : vector<1x24xi1> to vector<1x24xi1>
    %67 = vector.broadcast %66 : vector<1x24xi1> to vector<8x24xi1>
    %68 = arith.select %67, %65, %62 : vector<8x24xi1>, vector<8x24xf32>
    %69 = vector.extract_strided_slice %68 {offsets = [0, 23], sizes = [8, 1], strides = [1, 1]} : vector<8x24xf32> to vector<8x1xf32>
    %70 = vector.extract_strided_slice %68 {offsets = [0, 0], sizes = [8, 23], strides = [1, 1]} : vector<8x24xf32> to vector<8x23xf32>
    %71 = tpu.concatenate %69, %70 in 1 : vector<8x1xf32>, vector<8x23xf32> -> vector<8x24xf32>
    %72 = vector.shape_cast %7 : vector<1x24xi1> to vector<1x24xi1>
    %73 = vector.broadcast %72 : vector<1x24xi1> to vector<8x24xi1>
    %74 = arith.select %73, %71, %68 : vector<8x24xi1>, vector<8x24xf32>
    %75 = math.exp %74 : vector<8x24xf32>
    %76 = arith.mulf %0, %75 : vector<8x24xf32>
    %c1_34 = arith.constant 1 : index
    %c0_35 = arith.constant 0 : index
    %c0_36 = arith.constant 0 : index
    %c0_37 = arith.constant 0 : index
    %77 = vector.load %arg3[%c1_34, %c0_35, %c0_36, %c0_37] : memref<2x3x16x8xf32, #tpu.memory_space<vmem>>, vector<1x1x16x8xf32>
    %78 = vector.shape_cast %77 : vector<1x1x16x8xf32> to vector<16x8xf32>
    %cst_38 = arith.constant dense<0.000000e+00> : vector<16x24xf32>
    %79 = tpu.matmul %78, %76, %cst_38 {dimension_numbers = #tpu.dot_dimension_numbers<[1], [0], [0], [1], [0, 0, 1, 1], [], []>} : vector<16x8xf32>, vector<8x24xf32>, vector<16x24xf32> -> vector<16x24xf32>
    %c1_39 = arith.constant 1 : index
    %c1_40 = arith.constant 1 : index
    %c0_41 = arith.constant 0 : index
    %c0_42 = arith.constant 0 : index
    %80 = vector.load %arg3[%c1_39, %c1_40, %c0_41, %c0_42] : memref<2x3x16x8xf32, #tpu.memory_space<vmem>>, vector<1x1x16x8xf32>
    %81 = vector.shape_cast %80 : vector<1x1x16x8xf32> to vector<16x8xf32>
    %82 = vector.extract_strided_slice %76 {offsets = [0, 1], sizes = [8, 23], strides = [1, 1]} : vector<8x24xf32> to vector<8x23xf32>
    %83 = vector.extract_strided_slice %76 {offsets = [0, 0], sizes = [8, 1], strides = [1, 1]} : vector<8x24xf32> to vector<8x1xf32>
    %84 = tpu.concatenate %82, %83 in 1 : vector<8x23xf32>, vector<8x1xf32> -> vector<8x24xf32>
    %cst_43 = arith.constant dense<0.000000e+00> : vector<16x24xf32>
    %85 = tpu.matmul %81, %84, %cst_43 {dimension_numbers = #tpu.dot_dimension_numbers<[1], [0], [0], [1], [0, 0, 1, 1], [], []>} : vector<16x8xf32>, vector<8x24xf32>, vector<16x24xf32> -> vector<16x24xf32>
    %86 = arith.addf %79, %85 : vector<16x24xf32>
    %c1_44 = arith.constant 1 : index
    %c2_45 = arith.constant 2 : index
    %c0_46 = arith.constant 0 : index
    %c0_47 = arith.constant 0 : index
    %87 = vector.load %arg3[%c1_44, %c2_45, %c0_46, %c0_47] : memref<2x3x16x8xf32, #tpu.memory_space<vmem>>, vector<1x1x16x8xf32>
    %88 = vector.shape_cast %87 : vector<1x1x16x8xf32> to vector<16x8xf32>
    %89 = vector.extract_strided_slice %76 {offsets = [0, 2], sizes = [8, 22], strides = [1, 1]} : vector<8x24xf32> to vector<8x22xf32>
    %90 = vector.extract_strided_slice %76 {offsets = [0, 0], sizes = [8, 2], strides = [1, 1]} : vector<8x24xf32> to vector<8x2xf32>
    %91 = tpu.concatenate %89, %90 in 1 : vector<8x22xf32>, vector<8x2xf32> -> vector<8x24xf32>
    %cst_48 = arith.constant dense<0.000000e+00> : vector<16x24xf32>
    %92 = tpu.matmul %88, %91, %cst_48 {dimension_numbers = #tpu.dot_dimension_numbers<[1], [0], [0], [1], [0, 0, 1, 1], [], []>} : vector<16x8xf32>, vector<8x24xf32>, vector<16x24xf32> -> vector<16x24xf32>
    %93 = arith.addf %86, %92 : vector<16x24xf32>
    %cst_49 = arith.constant 0.000000e+00 : f32
    %94 = vector.broadcast %cst_49 : f32 to vector<16x24xf32>
    %95 = arith.cmpf oge, %93, %94 : vector<16x24xf32>
    %cst_50 = arith.constant 0.00999999977 : f32
    %96 = vector.broadcast %cst_50 : f32 to vector<16x24xf32>
    %97 = arith.mulf %96, %93 : vector<16x24xf32>
    %98 = arith.select %95, %93, %97 : vector<16x24xi1>, vector<16x24xf32>
    %c1_51 = arith.constant 1 : index
    %c0_52 = arith.constant 0 : index
    %c0_53 = arith.constant 0 : index
    %c0_54 = arith.constant 0 : index
    %99 = vector.load %arg4[%c1_51, %c0_52, %c0_53, %c0_54] : memref<2x3x8x16xf32, #tpu.memory_space<vmem>>, vector<1x1x8x16xf32>
    %100 = vector.shape_cast %99 : vector<1x1x8x16xf32> to vector<8x16xf32>
    %cst_55 = arith.constant dense<0.000000e+00> : vector<8x24xf32>
    %101 = tpu.matmul %100, %98, %cst_55 {dimension_numbers = #tpu.dot_dimension_numbers<[1], [0], [0], [1], [0, 0, 1, 1], [], []>} : vector<8x16xf32>, vector<16x24xf32>, vector<8x24xf32> -> vector<8x24xf32>
    %c1_56 = arith.constant 1 : index
    %c1_57 = arith.constant 1 : index
    %c0_58 = arith.constant 0 : index
    %c0_59 = arith.constant 0 : index
    %102 = vector.load %arg4[%c1_56, %c1_57, %c0_58, %c0_59] : memref<2x3x8x16xf32, #tpu.memory_space<vmem>>, vector<1x1x8x16xf32>
    %103 = vector.shape_cast %102 : vector<1x1x8x16xf32> to vector<8x16xf32>
    %104 = vector.extract_strided_slice %98 {offsets = [0, 1], sizes = [16, 23], strides = [1, 1]} : vector<16x24xf32> to vector<16x23xf32>
    %105 = vector.extract_strided_slice %98 {offsets = [0, 0], sizes = [16, 1], strides = [1, 1]} : vector<16x24xf32> to vector<16x1xf32>
    %106 = tpu.concatenate %104, %105 in 1 : vector<16x23xf32>, vector<16x1xf32> -> vector<16x24xf32>
    %cst_60 = arith.constant dense<0.000000e+00> : vector<8x24xf32>
    %107 = tpu.matmul %103, %106, %cst_60 {dimension_numbers = #tpu.dot_dimension_numbers<[1], [0], [0], [1], [0, 0, 1, 1], [], []>} : vector<8x16xf32>, vector<16x24xf32>, vector<8x24xf32> -> vector<8x24xf32>
    %108 = arith.addf %101, %107 : vector<8x24xf32>
    %c1_61 = arith.constant 1 : index
    %c2_62 = arith.constant 2 : index
    %c0_63 = arith.constant 0 : index
    %c0_64 = arith.constant 0 : index
    %109 = vector.load %arg4[%c1_61, %c2_62, %c0_63, %c0_64] : memref<2x3x8x16xf32, #tpu.memory_space<vmem>>, vector<1x1x8x16xf32>
    %110 = vector.shape_cast %109 : vector<1x1x8x16xf32> to vector<8x16xf32>
    %111 = vector.extract_strided_slice %98 {offsets = [0, 2], sizes = [16, 22], strides = [1, 1]} : vector<16x24xf32> to vector<16x22xf32>
    %112 = vector.extract_strided_slice %98 {offsets = [0, 0], sizes = [16, 2], strides = [1, 1]} : vector<16x24xf32> to vector<16x2xf32>
    %113 = tpu.concatenate %111, %112 in 1 : vector<16x22xf32>, vector<16x2xf32> -> vector<16x24xf32>
    %cst_65 = arith.constant dense<0.000000e+00> : vector<8x24xf32>
    %114 = tpu.matmul %110, %113, %cst_65 {dimension_numbers = #tpu.dot_dimension_numbers<[1], [0], [0], [1], [0, 0, 1, 1], [], []>} : vector<8x16xf32>, vector<16x24xf32>, vector<8x24xf32> -> vector<8x24xf32>
    %115 = arith.addf %108, %114 : vector<8x24xf32>
    %116 = math.tanh %115 : vector<8x24xf32>
    %117 = vector.extract_strided_slice %76 {offsets = [0, 2], sizes = [8, 22], strides = [1, 1]} : vector<8x24xf32> to vector<8x22xf32>
    %118 = vector.extract_strided_slice %76 {offsets = [0, 0], sizes = [8, 2], strides = [1, 1]} : vector<8x24xf32> to vector<8x2xf32>
    %119 = tpu.concatenate %117, %118 in 1 : vector<8x22xf32>, vector<8x2xf32> -> vector<8x24xf32>
    %120 = tpu.iota {dimensions = array<i32: 0>} : vector<8x1xi32>
    %c4_i32 = arith.constant 4 : i32
    %121 = vector.broadcast %c4_i32 : i32 to vector<8x1xi32>
    %122 = arith.cmpi slt, %120, %121 : vector<8x1xi32>
    %cst_66 = arith.constant -1.000000e+00 : f32
    %cst_67 = arith.constant 1.000000e+00 : f32
    %123 = vector.broadcast %cst_66 : f32 to vector<8x1xf32>
    %124 = vector.broadcast %cst_67 : f32 to vector<8x1xf32>
    %125 = arith.select %122, %123, %124 : vector<8x1xi1>, vector<8x1xf32>
    %126 = vector.broadcast %125 : vector<8x1xf32> to vector<8x24xf32>
    %127 = arith.mulf %126, %116 : vector<8x24xf32>
    %128 = arith.addf %119, %127 : vector<8x24xf32>
    %c0_68 = arith.constant 0 : index
    %c0_69 = arith.constant 0 : index
    %129 = vector.load %arg5[%c0_68, %c0_69] : memref<8x24xf32, #tpu.memory_space<vmem>>, vector<8x24xf32>
    tpu.vector_store %arg5[%c0_68, %c0_69], %128 {strides = array<i32>} : memref<8x24xf32, #tpu.memory_space<vmem>>, vector<8x24xf32>,
    return
  }
  func.func @transform_0(%arg0: i32) -> (i32, i32) {
    %c0_i32 = arith.constant 0 : i32
    %c0_i32_0 = arith.constant 0 : i32
    return %c0_i32, %arg0 : i32, i32
  }
  func.func @transform_1(%arg0: i32) -> (i32, i32) {
    %c0_i32 = arith.constant 0 : i32
    %c0_i32_0 = arith.constant 0 : i32
    %c0_i32_1 = arith.constant 0 : i32
    return %c0_i32, %c0_i32_0 : i32, i32
  }
  func.func @transform_2(%arg0: i32) -> (i32, i32, i32, i32) {
    %c0_i32 = arith.constant 0 : i32
    %c0_i32_0 = arith.constant 0 : i32
    %c0_i32_1 = arith.constant 0 : i32
    %c0_i32_2 = arith.constant 0 : i32
    %c0_i32_3 = arith.constant 0 : i32
    return %c0_i32, %c0_i32_0, %c0_i32_1, %c0_i32_2 : i32, i32, i32, i32
  }
  func.func @transform_3(%arg0: i32) -> (i32, i32, i32, i32) {
    %c0_i32 = arith.constant 0 : i32
    %c0_i32_0 = arith.constant 0 : i32
    %c0_i32_1 = arith.constant 0 : i32
    %c0_i32_2 = arith.constant 0 : i32
    %c0_i32_3 = arith.constant 0 : i32
    return %c0_i32, %c0_i32_0, %c0_i32_1, %c0_i32_2 : i32, i32, i32, i32
  }
  func.func @transform_4(%arg0: i32) -> (i32, i32) {
    %c0_i32 = arith.constant 0 : i32
    %c0_i32_0 = arith.constant 0 : i32
    return %c0_i32, %arg0 : i32, i32
  }
}

</mosaic_0001>

<llo_original>
// kernel: tpu_custom_call.1
$region0: #{tpu_custom_call.1}
  #allocation0 [shape = 'u32[]', space=smem, size = 0x4, offset = 0x4, fixed_abs, tag = 'smem constant byte address 0x4 - core index']
  #allocation1 [shape = 'u32[72,128]{1,0:T(1,128)}', space=vmem, size = 0x9000, scoped, tag = 'internal scratch']
  %s0 = inlined_call_operand.hbm [shape: f32[8,24], index: 0, kind: input, shape index: {}]
  %s1 = inlined_call_operand.hbm [shape: f32[8,24], index: 1, kind: output, shape index: {}]
  %s2 = sld [smem:[#allocation0]]
  $region18: #{tpu_custom_call.1} parent=0
    _
  %s4 = ssub.s32 1, %s2
  %s5 = scalar_select 0, %s4, %s2
  $region1: #{tpu_custom_call.1} parent=0
    #allocation2 [shape = 'u8[4096]{0}', space=vmem, size = 0x1000, scoped, tag = 'input window, operand 0, single buffered']
    #allocation3 [shape = 's32[1]{0}', space=sflag, size = 0x4, scoped, tag = 'scoped memory for tpu_custom_call.1']
    #allocation4 [shape = 's32[1]{0}', space=sflag, size = 0x4, scoped, tag = 'scoped memory for tpu_custom_call.1']
    #allocation5 [shape = 'u8[4096]{0}', space=vmem, size = 0x1000, scoped, tag = 'output window, operand 0, single buffered']
    %6 = vsyncpa [#allocation3], 0
    %7 = vsyncpa [#allocation4], 0
    // Predicated region
    $region2: #{tpu_custom_call.1} parent=1 // pred_check
      _
    $region3: #{tpu_custom_call.1} parent=1 // pred_check_branch
      %9 = sbr.rel (0) target = $region5
    $region4: #{tpu_custom_call.1} parent=1 // pred_region
      %11 = vsyncadd [#allocation3], 0
      %s13 = sshll.u32 %s0, 4
      %s14 = int_to_ptr.hbm [resolvable:$true] %s13
      %s15 = sshll.u32 [#allocation2], 4
      %s16 = int_to_ptr.vmem [resolvable:$true] %s15
      %18 = dma.hbm_to_vmem [thread:$0]  %s14, 128, %s16, [#allocation3]
    $region5: #{tpu_custom_call.1} parent=1 // pred_fallthru
      _
    // Predicated region
    $region6: #{tpu_custom_call.1} parent=1 // pred_check
      _
    $region7: #{tpu_custom_call.1} parent=1 // pred_check_branch
      %20 = sbr.rel (0) target = $region9
    $region8: #{tpu_custom_call.1} parent=1 // pred_region
      %22 = dma.done [#allocation3], 128
    $region9: #{tpu_custom_call.1} parent=1 // pred_fallthru
      _
    %v23 = vld [vmem:[#allocation2] sm:$0xff]
    %vm24 = vcmask 1047744
    %25 = vrot.lane.b32.xlu0 %v23, 24
    %v26 = vpop.permute.xlu0 %25
    %v27 = vsel %vm24, %v26, %v23
    %28 = vrot.lane.b32.xlu0 %v27, 24
    %v29 = vpop.permute.xlu0 %28
    %v30 = vsel %vm24, %v29, %v23
    %32 = vrot.lane.b32.xlu0 %v30, 105
    %v33 = vpop.permute.xlu0 %32
    %vm35 = vcmask 195584
    %36 = vst.msk [vmem:[#allocation5] sm:$0xff] %vm35, %v33
    // Predicated region
    $region10: #{tpu_custom_call.1} parent=1 // pred_check
      _
    $region11: #{tpu_custom_call.1} parent=1 // pred_check_branch
      %38 = sbr.rel (0) target = $region13
    $region12: #{tpu_custom_call.1} parent=1 // pred_region
      %40 = vsyncadd [#allocation4], 0
      %s42 = sshll.u32 [#allocation5], 4
      %s43 = int_to_ptr.vmem [resolvable:$true] %s42
      %s44 = sshll.u32 %s1, 4
      %s45 = int_to_ptr.hbm [resolvable:$true] %s44
      %47 = dma.vmem_to_hbm [thread:$0]  %s43, 128, %s45, [#allocation4]
    $region13: #{tpu_custom_call.1} parent=1 // pred_fallthru
      _
    // Predicated region
    $region14: #{tpu_custom_call.1} parent=1 // pred_check
      _
    $region15: #{tpu_custom_call.1} parent=1 // pred_check_branch
      %49 = sbr.rel (0) target = $region17
    $region16: #{tpu_custom_call.1} parent=1 // pred_region
      %51 = dma.done [#allocation4], 128
    $region17: #{tpu_custom_call.1} parent=1 // pred_fallthru
      _
    %52 = vsyncpa [#allocation3], 1
    %53 = vsyncpa [#allocation4], 1

// kernel: tpu_custom_call.1
$region0: #{tpu_custom_call.1}
  #allocation0 [shape = 'u32[]', space=smem, size = 0x4, offset = 0x4, fixed_abs, tag = 'smem constant byte address 0x4 - core index']
  #allocation1 [shape = 'u32[72,128]{1,0:T(1,128)}', space=vmem, size = 0x9000, scoped, tag = 'internal scratch']
  %s0 = inlined_call_operand.vmem [shape: f32[8,24], index: 0, kind: input, shape index: {}]
  %s1 = inlined_call_operand.vmem [shape: f32[2,24], index: 1, kind: input, shape index: {}]
  %s2 = inlined_call_operand.vmem [shape: f32[2,3,16,8], index: 2, kind: input, shape index: {}]
  %s3 = inlined_call_operand.vmem [shape: f32[2,3,8,16], index: 3, kind: input, shape index: {}]
  %s4 = inlined_call_operand.hbm [shape: f32[8,24], index: 4, kind: output, shape index: {}]
  %s5 = sld [smem:[#allocation0]]
  $region26: #{tpu_custom_call.1} parent=0
    _
  %s7 = ssub.s32 1, %s5
  %s8 = scalar_select 0, %s7, %s5
  $region1: #{tpu_custom_call.1} parent=0
    #allocation2 [shape = 'u8[4096]{0}', space=vmem, size = 0x1000, scoped, tag = 'output window, operand 0, single buffered']
    #allocation3 [shape = 's32[1]{0}', space=sflag, size = 0x4, scoped, tag = 'scoped memory for tpu_custom_call.1']
    %9 = vsyncpa [#allocation3], 0
    // Predicated region
    $region2: #{tpu_custom_call.1} parent=1 // pred_check
      _
    $region3: #{tpu_custom_call.1} parent=1 // pred_check_branch
      %11 = sbr.rel (0) target = $region5
    $region4: #{tpu_custom_call.1} parent=1 // pred_region
      _
    $region5: #{tpu_custom_call.1} parent=1 // pred_fallthru
      _
    // Predicated region
    $region6: #{tpu_custom_call.1} parent=1 // pred_check
      _
    $region7: #{tpu_custom_call.1} parent=1 // pred_check_branch
      %13 = sbr.rel (0) target = $region9
    $region8: #{tpu_custom_call.1} parent=1 // pred_region
      _
    $region9: #{tpu_custom_call.1} parent=1 // pred_fallthru
      _
    // Predicated region
    $region10: #{tpu_custom_call.1} parent=1 // pred_check
      _
    $region11: #{tpu_custom_call.1} parent=1 // pred_check_branch
      %15 = sbr.rel (0) target = $region13
    $region12: #{tpu_custom_call.1} parent=1 // pred_region
      _
    $region13: #{tpu_custom_call.1} parent=1 // pred_fallthru
      _
    // Predicated region
    $region14: #{tpu_custom_call.1} parent=1 // pred_check
      _
    $region15: #{tpu_custom_call.1} parent=1 // pred_check_branch
      %17 = sbr.rel (0) target = $region17
    $region16: #{tpu_custom_call.1} parent=1 // pred_region
      _
    $region17: #{tpu_custom_call.1} parent=1 // pred_fallthru
      _
    %v18 = vld [vmem:[%s0] sm:$0xff]
    %v19 = vld [vmem:[%s1] sm:$0x3]
    %vm20 = vcmp.gt.f32.partialorder %v19, 0.5
    %v21 = vld [vmem:[%s2] sm:$0xff]
    %v22 = vld [vmem:[%s2 + $0x8] sm:$0xff]
    %s23 = scalar_lea.vmem %s2, 16
    %v24 = vld [vmem:[%s23] sm:$0xff]
    %v25 = vld [vmem:[%s23 + $0x8] sm:$0xff]
    %27 = vrot.lane.b32.xlu0 %v18, 127
    %v28 = vpop.permute.xlu0 %27
    %30 = vrot.lane.b32.xlu0 %v18, 23
    %v31 = vpop.permute.xlu0 %30
    %vm33 = vcmask 187392
    %v34 = vsel %vm33, %v28, %v31
    %vm35 = vcmask 64512
    %v37 = vsel %vm35, %v24, 0
    %v40 = vsel %vm35, %v25, 0
    %42 = vmatpush.msra.mxu0 0.0
    %43 = vmatpush.msra.mxu0 0.0
    %44 = vmatpush.msra.mxu0 0.0
    %45 = vmatpush.msra.mxu0 0.0
    %46 = vmatpush.msra.mxu0 0.0
    %47 = vmatpush.msra.mxu0 0.0
    %48 = vmatpush.msra.mxu0 0.0
    %49 = vmatpush.msra.mxu0 0.0
    %50 = vmatpush.msra.mxu0 0.0
    %51 = vmatpush.msra.mxu0 0.0
    %52 = vmatpush.msra.mxu0 0.0
    %53 = vmatpush.msra.mxu0 0.0
    %54 = vmatpush.msra.mxu0 0.0
    %55 = vmatpush.msra.mxu0 0.0
    %56 = vmatpush.msra.mxu0 0.0
    %57 = vmatpush.msra.mxu0 %v34
    %58 = vmatmul.f32.gmra.mxu0 %v37
    %v59 = vpop.f32.mrf.mxu0
    %v60 = vadd.f32 0.0, %v59
    %61 = vmatmul.f32.gmra.mxu0 %v40
    %v62 = vpop.f32.mrf.mxu0
    %v63 = vadd.f32 0.0, %v62
    %64 = vdwg.mxu0
    %v66 = vsel %vm35, %v21, 0
    %v69 = vsel %vm35, %v22, 0
    %71 = vmatpush.msra.mxu0 0.0
    %72 = vmatpush.msra.mxu0 0.0
    %73 = vmatpush.msra.mxu0 0.0
    %74 = vmatpush.msra.mxu0 0.0
    %75 = vmatpush.msra.mxu0 0.0
    %76 = vmatpush.msra.mxu0 0.0
    %77 = vmatpush.msra.mxu0 0.0
    %78 = vmatpush.msra.mxu0 0.0
    %79 = vmatpush.msra.mxu0 0.0
    %80 = vmatpush.msra.mxu0 0.0
    %81 = vmatpush.msra.mxu0 0.0
    %82 = vmatpush.msra.mxu0 0.0
    %83 = vmatpush.msra.mxu0 0.0
    %84 = vmatpush.msra.mxu0 0.0
    %85 = vmatpush.msra.mxu0 0.0
    %86 = vmatpush.msra.mxu0 %v18
    %87 = vmatmul.f32.gmra.mxu0 %v66
    %v88 = vpop.f32.mrf.mxu0
    %v89 = vadd.f32 %v60, %v88
    %90 = vmatmul.f32.gmra.mxu0 %v69
    %v91 = vpop.f32.mrf.mxu0
    %v92 = vadd.f32 %v63, %v91
    %93 = vdwg.mxu0
    %s94 = scalar_lea.vmem %s2, 32
    %v95 = vld [vmem:[%s94] sm:$0xff]
    %v96 = vld [vmem:[%s94 + $0x8] sm:$0xff]
    %97 = vrot.lane.b32.xlu0 %v18, 126
    %v98 = vpop.permute.xlu0 %97
    %100 = vrot.lane.b32.xlu0 %v18, 22
    %v101 = vpop.permute.xlu0 %100
    %vm103 = vcmask 179200
    %v104 = vsel %vm103, %v98, %v101
    %v106 = vsel %vm35, %v95, 0
    %v109 = vsel %vm35, %v96, 0
    %111 = vmatpush.msra.mxu0 0.0
    %112 = vmatpush.msra.mxu0 0.0
    %113 = vmatpush.msra.mxu0 0.0
    %114 = vmatpush.msra.mxu0 0.0
    %115 = vmatpush.msra.mxu0 0.0
    %116 = vmatpush.msra.mxu0 0.0
    %117 = vmatpush.msra.mxu0 0.0
    %118 = vmatpush.msra.mxu0 0.0
    %119 = vmatpush.msra.mxu0 0.0
    %120 = vmatpush.msra.mxu0 0.0
    %121 = vmatpush.msra.mxu0 0.0
    %122 = vmatpush.msra.mxu0 0.0
    %123 = vmatpush.msra.mxu0 0.0
    %124 = vmatpush.msra.mxu0 0.0
    %125 = vmatpush.msra.mxu0 0.0
    %126 = vmatpush.msra.mxu0 %v104
    %127 = vmatmul.f32.gmra.mxu0 %v106
    %v128 = vpop.f32.mrf.mxu0
    %v129 = vadd.f32 0.0, %v128
    %130 = vmatmul.f32.gmra.mxu0 %v109
    %v131 = vpop.f32.mrf.mxu0
    %v132 = vadd.f32 0.0, %v131
    %133 = vdwg.mxu0
    %v134 = vadd.f32 %v89, %v129
    %v135 = vadd.f32 %v92, %v132
    %vm136 = vcmp.ge.f32.partialorder %v134, 0.0
    %vm137 = vcmp.ge.f32.partialorder %v135, 0.0
    %v138 = vmul.f32 %v134, 0.01
    %v139 = vmul.f32 %v135, 0.01
    %v140 = vsel %vm136, %v134, %v138
    %v141 = vsel %vm137, %v135, %v139
    %v142 = vld [vmem:[%s3] sm:$0xff]
    %s143 = scalar_lea.vmem %s3, 8
    %v144 = vld [vmem:[%s143] sm:$0xff]
    %147 = vrot.lane.b32.xlu0 %v140, 127
    %v148 = vpop.permute.xlu0 %147
    %149 = vrot.lane.b32.xlu0 %v141, 127
    %v150 = vpop.permute.xlu0 %149
    %153 = vrot.lane.b32.xlu0 %v140, 23
    %v154 = vpop.permute.xlu0 %153
    %155 = vrot.lane.b32.xlu0 %v141, 23
    %v156 = vpop.permute.xlu0 %155
    %v159 = vsel %vm33, %v148, %v154
    %v160 = vsel %vm33, %v150, %v156
    %vm161 = vcmask 130048
    %v163 = vsel %vm161, %v144, 0
    %165 = vmatpush.msra.mxu0 0.0
    %166 = vmatpush.msra.mxu0 0.0
    %167 = vmatpush.msra.mxu0 0.0
    %168 = vmatpush.msra.mxu0 0.0
    %169 = vmatpush.msra.mxu0 0.0
    %170 = vmatpush.msra.mxu0 0.0
    %171 = vmatpush.msra.mxu0 0.0
    %172 = vmatpush.msra.mxu0 0.0
    %173 = vmatpush.msra.mxu0 0.0
    %174 = vmatpush.msra.mxu0 0.0
    %175 = vmatpush.msra.mxu0 0.0
    %176 = vmatpush.msra.mxu0 0.0
    %177 = vmatpush.msra.mxu0 0.0
    %178 = vmatpush.msra.mxu0 0.0
    %179 = vmatpush.msra.mxu0 %v160
    %180 = vmatpush.msra.mxu0 %v159
    %181 = vmatmul.f32.gmra.mxu0 %v163
    %v182 = vpop.f32.mrf.mxu0
    %v183 = vadd.f32 0.0, %v182
    %184 = vdwg.mxu0
    %v186 = vsel %vm161, %v142, 0
    %188 = vmatpush.msra.mxu0 0.0
    %189 = vmatpush.msra.mxu0 0.0
    %190 = vmatpush.msra.mxu0 0.0
    %191 = vmatpush.msra.mxu0 0.0
    %192 = vmatpush.msra.mxu0 0.0
    %193 = vmatpush.msra.mxu0 0.0
    %194 = vmatpush.msra.mxu0 0.0
    %195 = vmatpush.msra.mxu0 0.0
    %196 = vmatpush.msra.mxu0 0.0
    %197 = vmatpush.msra.mxu0 0.0
    %198 = vmatpush.msra.mxu0 0.0
    %199 = vmatpush.msra.mxu0 0.0
    %200 = vmatpush.msra.mxu0 0.0
    %201 = vmatpush.msra.mxu0 0.0
    %202 = vmatpush.msra.mxu0 %v141
    %203 = vmatpush.msra.mxu0 %v140
    %204 = vmatmul.f32.gmra.mxu0 %v186
    %v205 = vpop.f32.mrf.mxu0
    %v206 = vadd.f32 %v183, %v205
    %207 = vdwg.mxu0
    %s208 = scalar_lea.vmem %s3, 16
    %v209 = vld [vmem:[%s208] sm:$0xff]
    %210 = vrot.lane.b32.xlu0 %v140, 126
    %v211 = vpop.permute.xlu0 %210
    %212 = vrot.lane.b32.xlu0 %v141, 126
    %v213 = vpop.permute.xlu0 %212
    %216 = vrot.lane.b32.xlu0 %v140, 22
    %v217 = vpop.permute.xlu0 %216
    %218 = vrot.lane.b32.xlu0 %v141, 22
    %v219 = vpop.permute.xlu0 %218
    %v222 = vsel %vm103, %v211, %v217
    %v223 = vsel %vm103, %v213, %v219
    %v225 = vsel %vm161, %v209, 0
    %227 = vmatpush.msra.mxu0 0.0
    %228 = vmatpush.msra.mxu0 0.0
    %229 = vmatpush.msra.mxu0 0.0
    %230 = vmatpush.msra.mxu0 0.0
    %231 = vmatpush.msra.mxu0 0.0
    %232 = vmatpush.msra.mxu0 0.0
    %233 = vmatpush.msra.mxu0 0.0
    %234 = vmatpush.msra.mxu0 0.0
    %235 = vmatpush.msra.mxu0 0.0
    %236 = vmatpush.msra.mxu0 0.0
    %237 = vmatpush.msra.mxu0 0.0
    %238 = vmatpush.msra.mxu0 0.0
    %239 = vmatpush.msra.mxu0 0.0
    %240 = vmatpush.msra.mxu0 0.0
    %241 = vmatpush.msra.mxu0 %v223
    %242 = vmatpush.msra.mxu0 %v222
    %243 = vmatmul.f32.gmra.mxu0 %v225
    %v244 = vpop.f32.mrf.mxu0
    %v245 = vadd.f32 0.0, %v244
    %246 = vdwg.mxu0
    %v247 = vadd.f32 %v206, %v245
    %v248 = vtanh.pop %v247
    %250 = vrot.lane.b32.xlu0 %v248, 106
    %v251 = vpop.permute.xlu0 %250
    %253 = vrot.lane.b32.xlu0 %v248, 2
    %v254 = vpop.permute.xlu0 %253
    %vm256 = vcmask 15360
    %v257 = vsel %vm256, %v251, %v254
    %259 = vrot.lane.b32.xlu0 %v257, 127
    %v260 = vpop.permute.xlu0 %259
    %262 = vrot.lane.b32.xlu0 %v257, 23
    %v263 = vpop.permute.xlu0 %262
    %v265 = vsel %vm33, %v260, %v263
    %v266 = vsel %vm20, 1, 0
    %v267 = vperm.slane %v266, 0
    %vm268 = vcmp.eq.s32.totalorder %v267, 1
    %v269 = vsel %vm268, %v265, %v257
    %271 = vrot.lane.b32.xlu0 %v269, 127
    %v272 = vpop.permute.xlu0 %271
    %274 = vrot.lane.b32.xlu0 %v269, 23
    %v275 = vpop.permute.xlu0 %274
    %v277 = vsel %vm33, %v272, %v275
    %v278 = vsel %vm268, %v277, %v257
    %280 = vrot.lane.b32.xlu0 %v278, 105
    %v281 = vpop.permute.xlu0 %280
    %283 = vrot.lane.b32.xlu0 %v278, 1
    %v284 = vpop.permute.xlu0 %283
    %vm286 = vcmask 7168
    %v287 = vsel %vm286, %v281, %v284
    %v288 = vperm.slane %v266, 1
    %vm289 = vcmp.eq.s32.totalorder %v288, 1
    %v290 = vsel %vm289, %v287, %v278
    %292 = vrot.lane.b32.xlu0 %v290, 105
    %v293 = vpop.permute.xlu0 %292
    %295 = vrot.lane.b32.xlu0 %v290, 1
    %v296 = vpop.permute.xlu0 %295
    %v298 = vsel %vm286, %v293, %v296
    %v299 = vsel %vm289, %v298, %v278
    %v300 = vmul.f32 %v299, 1.442695
    %v301 = vpow.pop %v300
    %v302 = vmul.f32 %v18, %v301
    %s303 = scalar_lea.vmem %s2, 48
    %v304 = vld [vmem:[%s303] sm:$0xff]
    %v305 = vld [vmem:[%s303 + $0x8] sm:$0xff]
    %s306 = scalar_lea.vmem %s2, 64
    %v307 = vld [vmem:[%s306] sm:$0xff]
    %v308 = vld [vmem:[%s306 + $0x8] sm:$0xff]
    %310 = vrot.lane.b32.xlu0 %v302, 127
    %v311 = vpop.permute.xlu0 %310
    %313 = vrot.lane.b32.xlu0 %v302, 23
    %v314 = vpop.permute.xlu0 %313
    %v316 = vsel %vm33, %v311, %v314
    %v318 = vsel %vm35, %v307, 0
    %v321 = vsel %vm35, %v308, 0
    %323 = vmatpush.msra.mxu0 0.0
    %324 = vmatpush.msra.mxu0 0.0
    %325 = vmatpush.msra.mxu0 0.0
    %326 = vmatpush.msra.mxu0 0.0
    %327 = vmatpush.msra.mxu0 0.0
    %328 = vmatpush.msra.mxu0 0.0
    %329 = vmatpush.msra.mxu0 0.0
    %330 = vmatpush.msra.mxu0 0.0
    %331 = vmatpush.msra.mxu0 0.0
    %332 = vmatpush.msra.mxu0 0.0
    %333 = vmatpush.msra.mxu0 0.0
    %334 = vmatpush.msra.mxu0 0.0
    %335 = vmatpush.msra.mxu0 0.0
    %336 = vmatpush.msra.mxu0 0.0
    %337 = vmatpush.msra.mxu0 0.0
    %338 = vmatpush.msra.mxu0 %v316
    %339 = vmatmul.f32.gmra.mxu0 %v318
    %v340 = vpop.f32.mrf.mxu0
    %v341 = vadd.f32 0.0, %v340
    %342 = vmatmul.f32.gmra.mxu0 %v321
    %v343 = vpop.f32.mrf.mxu0
    %v344 = vadd.f32 0.0, %v343
    %345 = vdwg.mxu0
    %v347 = vsel %vm35, %v304, 0
    %v350 = vsel %vm35, %v305, 0
    %352 = vmatpush.msra.mxu0 0.0
    %353 = vmatpush.msra.mxu0 0.0
    %354 = vmatpush.msra.mxu0 0.0
    %355 = vmatpush.msra.mxu0 0.0
    %356 = vmatpush.msra.mxu0 0.0
    %357 = vmatpush.msra.mxu0 0.0
    %358 = vmatpush.msra.mxu0 0.0
    %359 = vmatpush.msra.mxu0 0.0
    %360 = vmatpush.msra.mxu0 0.0
    %361 = vmatpush.msra.mxu0 0.0
    %362 = vmatpush.msra.mxu0 0.0
    %363 = vmatpush.msra.mxu0 0.0
    %364 = vmatpush.msra.mxu0 0.0
    %365 = vmatpush.msra.mxu0 0.0
    %366 = vmatpush.msra.mxu0 0.0
    %367 = vmatpush.msra.mxu0 %v302
    %368 = vmatmul.f32.gmra.mxu0 %v347
    %v369 = vpop.f32.mrf.mxu0
    %v370 = vadd.f32 %v341, %v369
    %371 = vmatmul.f32.gmra.mxu0 %v350
    %v372 = vpop.f32.mrf.mxu0
    %v373 = vadd.f32 %v344, %v372
    %374 = vdwg.mxu0
    %s375 = scalar_lea.vmem %s2, 80
    %v376 = vld [vmem:[%s375] sm:$0xff]
    %v377 = vld [vmem:[%s375 + $0x8] sm:$0xff]
    %378 = vrot.lane.b32.xlu0 %v302, 126
    %v379 = vpop.permute.xlu0 %378
    %381 = vrot.lane.b32.xlu0 %v302, 22
    %v382 = vpop.permute.xlu0 %381
    %v384 = vsel %vm103, %v379, %v382
    %v386 = vsel %vm35, %v376, 0
    %v389 = vsel %vm35, %v377, 0
    %391 = vmatpush.msra.mxu0 0.0
    %392 = vmatpush.msra.mxu0 0.0
    %393 = vmatpush.msra.mxu0 0.0
    %394 = vmatpush.msra.mxu0 0.0
    %395 = vmatpush.msra.mxu0 0.0
    %396 = vmatpush.msra.mxu0 0.0
    %397 = vmatpush.msra.mxu0 0.0
    %398 = vmatpush.msra.mxu0 0.0
    %399 = vmatpush.msra.mxu0 0.0
    %400 = vmatpush.msra.mxu0 0.0
    %401 = vmatpush.msra.mxu0 0.0
    %402 = vmatpush.msra.mxu0 0.0
    %403 = vmatpush.msra.mxu0 0.0
    %404 = vmatpush.msra.mxu0 0.0
    %405 = vmatpush.msra.mxu0 0.0
    %406 = vmatpush.msra.mxu0 %v384
    %407 = vmatmul.f32.gmra.mxu0 %v386
    %v408 = vpop.f32.mrf.mxu0
    %v409 = vadd.f32 0.0, %v408
    %410 = vmatmul.f32.gmra.mxu0 %v389
    %v411 = vpop.f32.mrf.mxu0
    %v412 = vadd.f32 0.0, %v411
    %413 = vdwg.mxu0
    %v414 = vadd.f32 %v370, %v409
    %v415 = vadd.f32 %v373, %v412
    %vm416 = vcmp.ge.f32.partialorder %v414, 0.0
    %vm417 = vcmp.ge.f32.partialorder %v415, 0.0
    %v418 = vmul.f32 %v414, 0.01
    %v419 = vmul.f32 %v415, 0.01
    %v420 = vsel %vm416, %v414, %v418
    %v421 = vsel %vm417, %v415, %v419
    %s422 = scalar_lea.vmem %s3, 24
    %v423 = vld [vmem:[%s422] sm:$0xff]
    %s424 = scalar_lea.vmem %s3, 32
    %v425 = vld [vmem:[%s424] sm:$0xff]
    %428 = vrot.lane.b32.xlu0 %v420, 127
    %v429 = vpop.permute.xlu0 %428
    %430 = vrot.lane.b32.xlu0 %v421, 127
    %v431 = vpop.permute.xlu0 %430
    %434 = vrot.lane.b32.xlu0 %v420, 23
    %v435 = vpop.permute.xlu0 %434
    %436 = vrot.lane.b32.xlu0 %v421, 23
    %v437 = vpop.permute.xlu0 %436
    %v440 = vsel %vm33, %v429, %v435
    %v441 = vsel %vm33, %v431, %v437
    %v443 = vsel %vm161, %v425, 0
    %445 = vmatpush.msra.mxu0 0.0
    %446 = vmatpush.msra.mxu0 0.0
    %447 = vmatpush.msra.mxu0 0.0
    %448 = vmatpush.msra.mxu0 0.0
    %449 = vmatpush.msra.mxu0 0.0
    %450 = vmatpush.msra.mxu0 0.0
    %451 = vmatpush.msra.mxu0 0.0
    %452 = vmatpush.msra.mxu0 0.0
    %453 = vmatpush.msra.mxu0 0.0
    %454 = vmatpush.msra.mxu0 0.0
    %455 = vmatpush.msra.mxu0 0.0
    %456 = vmatpush.msra.mxu0 0.0
    %457 = vmatpush.msra.mxu0 0.0
    %458 = vmatpush.msra.mxu0 0.0
    %459 = vmatpush.msra.mxu0 %v441
    %460 = vmatpush.msra.mxu0 %v440
    %461 = vmatmul.f32.gmra.mxu0 %v443
    %v462 = vpop.f32.mrf.mxu0
    %v463 = vadd.f32 0.0, %v462
    %464 = vdwg.mxu0
    %v466 = vsel %vm161, %v423, 0
    %468 = vmatpush.msra.mxu0 0.0
    %469 = vmatpush.msra.mxu0 0.0
    %470 = vmatpush.msra.mxu0 0.0
    %471 = vmatpush.msra.mxu0 0.0
    %472 = vmatpush.msra.mxu0 0.0
    %473 = vmatpush.msra.mxu0 0.0
    %474 = vmatpush.msra.mxu0 0.0
    %475 = vmatpush.msra.mxu0 0.0
    %476 = vmatpush.msra.mxu0 0.0
    %477 = vmatpush.msra.mxu0 0.0
    %478 = vmatpush.msra.mxu0 0.0
    %479 = vmatpush.msra.mxu0 0.0
    %480 = vmatpush.msra.mxu0 0.0
    %481 = vmatpush.msra.mxu0 0.0
    %482 = vmatpush.msra.mxu0 %v421
    %483 = vmatpush.msra.mxu0 %v420
    %484 = vmatmul.f32.gmra.mxu0 %v466
    %v485 = vpop.f32.mrf.mxu0
    %v486 = vadd.f32 %v463, %v485
    %487 = vdwg.mxu0
    %s488 = scalar_lea.vmem %s3, 40
    %v489 = vld [vmem:[%s488] sm:$0xff]
    %490 = vrot.lane.b32.xlu0 %v420, 126
    %v491 = vpop.permute.xlu0 %490
    %492 = vrot.lane.b32.xlu0 %v421, 126
    %v493 = vpop.permute.xlu0 %492
    %496 = vrot.lane.b32.xlu0 %v420, 22
    %v497 = vpop.permute.xlu0 %496
    %498 = vrot.lane.b32.xlu0 %v421, 22
    %v499 = vpop.permute.xlu0 %498
    %v502 = vsel %vm103, %v491, %v497
    %v503 = vsel %vm103, %v493, %v499
    %v505 = vsel %vm161, %v489, 0
    %507 = vmatpush.msra.mxu0 0.0
    %508 = vmatpush.msra.mxu0 0.0
    %509 = vmatpush.msra.mxu0 0.0
    %510 = vmatpush.msra.mxu0 0.0
    %511 = vmatpush.msra.mxu0 0.0
    %512 = vmatpush.msra.mxu0 0.0
    %513 = vmatpush.msra.mxu0 0.0
    %514 = vmatpush.msra.mxu0 0.0
    %515 = vmatpush.msra.mxu0 0.0
    %516 = vmatpush.msra.mxu0 0.0
    %517 = vmatpush.msra.mxu0 0.0
    %518 = vmatpush.msra.mxu0 0.0
    %519 = vmatpush.msra.mxu0 0.0
    %520 = vmatpush.msra.mxu0 0.0
    %521 = vmatpush.msra.mxu0 %v503
    %522 = vmatpush.msra.mxu0 %v502
    %523 = vmatmul.f32.gmra.mxu0 %v505
    %v524 = vpop.f32.mrf.mxu0
    %v525 = vadd.f32 0.0, %v524
    %526 = vdwg.mxu0
    %v527 = vadd.f32 %v486, %v525
    %v528 = vtanh.pop %v527
    %v529 = vlaneseq
    %v530 = vshrl.u32 %v529, 7
    %vm531 = vcmp.lt.s32.totalorder %v530, 4
    %v532 = vsel %vm531, -1.0, 1.0
    %v533 = vmul.f32 %v532, %v528
    %v534 = vadd.f32 %v384, %v533
    %vm535 = vcmask 195584
    %536 = vst.msk [vmem:[#allocation2] sm:$0xff] %vm535, %v534
    // Predicated region
    $region18: #{tpu_custom_call.1} parent=1 // pred_check
      _
    $region19: #{tpu_custom_call.1} parent=1 // pred_check_branch
      %538 = sbr.rel (0) target = $region21
    $region20: #{tpu_custom_call.1} parent=1 // pred_region
      %540 = vsyncadd [#allocation3], 0
      %s542 = sshll.u32 [#allocation2], 4
      %s543 = int_to_ptr.vmem [resolvable:$true] %s542
      %s544 = sshll.u32 %s4, 4
      %s545 = int_to_ptr.hbm [resolvable:$true] %s544
      %547 = dma.vmem_to_hbm [thread:$0]  %s543, 128, %s545, [#allocation3]
    $region21: #{tpu_custom_call.1} parent=1 // pred_fallthru
      _
    // Predicated region
    $region22: #{tpu_custom_call.1} parent=1 // pred_check
      _
    $region23: #{tpu_custom_call.1} parent=1 // pred_check_branch
      %549 = sbr.rel (0) target = $region25
    $region24: #{tpu_custom_call.1} parent=1 // pred_region
      %551 = dma.done [#allocation3], 128
    $region25: #{tpu_custom_call.1} parent=1 // pred_fallthru
      _
    %552 = vsyncpa [#allocation3], 1

</llo_original>
